<compile_context>
chip_gen: v6e
topology: v6e:2x2x1
jax: 0.10.0
libtpu: 0.0.40
codegen_flags: <defaults>
</compile_context>

<pallas_src>
import functools

import jax
import jax.numpy as jnp
from jax.experimental import pallas as pl
from jax.experimental.pallas import tpu as pltpu


def _fused_decoder_kernel(*refs, activations):
    """Fully fused CommonDecoder forward.

    refs layout:
      refs[0]                      : x            (batch, d0)
      refs[1 + 2*i]                : w_pack_i     (3, d_i, d_{i+1})  = [w_mu, w_log_sig, eps_w]
      refs[2 + 2*i]                : b_pack_i     (3, 1,  d_{i+1})   = [b_mu, b_log_sig, eps_b]
      refs[1 + 2*n_layers]         : output       (batch, d_last)
    """
    n_layers = len(activations)
    x_ref = refs[0]
    o_ref = refs[1 + 2 * n_layers]

    h = x_ref[...]
    for i, act in enumerate(activations):
        w_ref = refs[1 + 2 * i]
        b_ref = refs[2 + 2 * i]

        # Sample weights/bias from the posterior (elementwise, VPU + EUP).
        w = w_ref[0] + jnp.exp(w_ref[1]) * w_ref[2]          # (d_in, d_out)
        b = b_ref[0] + jnp.exp(b_ref[1]) * b_ref[2]          # (1,   d_out)

        # Linear layer on the MXU with f32 accumulation; intermediate `h`
        # stays on-chip (no HBM round trip between layers).
        h = jnp.dot(h, w, preferred_element_type=jnp.float32) + b

        if act == "relu":
            h = jnp.maximum(h, 0.0)
        elif act == "sigmoid":
            h = jax.nn.sigmoid(h)
        elif act == "none":
            pass
        else:
            raise ValueError(f"unsupported activation: {act}")

    o_ref[...] = h.astype(o_ref.dtype)


def common_decoder_forward(x, params, eps, activations):
    """CommonDecoder.forward(x): one fused Pallas kernel over all BNN layers."""
    n_layers = len(activations)
    batch = x.shape[0]
    d_out_final = params[-1][0].shape[1]

    # Pack per-layer operands: 2 inputs per layer instead of 7.
    packed = []
    for (w_mu, w_ls, b_mu, b_ls), (eps_w, eps_b) in zip(params, eps):
        packed.append(jnp.stack([w_mu, w_ls, eps_w], axis=0))   # (3, d_in, d_out)
        packed.append(jnp.stack([b_mu, b_ls, eps_b], axis=0))   # (3, 1,   d_out)

    kernel = functools.partial(_fused_decoder_kernel,
                               activations=tuple(activations))

    # No grid: the whole problem (a few tens of KB) lives in VMEM; a grid of 1
    # would only instantiate a useless double-buffered pipeline.
    vmem_spec = pl.BlockSpec(memory_space=pltpu.MemorySpace.VMEM)
    return pl.pallas_call(
        kernel,
        out_shape=jax.ShapeDtypeStruct((batch, d_out_final), jnp.float32),
        in_specs=[vmem_spec] * (1 + 2 * n_layers),
        out_specs=vmem_spec,
    )(x, *packed)


def init_common_decoder(key, dimensions, activations):
    """Deterministic init of the BNN layer posteriors (mu ~ N(0, 0.1), log_sig = -6)."""
    params = []
    for i in range(len(activations)):
        d_in, d_out = dimensions[i], dimensions[i + 1]
        key, kw, kb = jax.random.split(key, 3)
        w_mu = 0.1 * jax.random.normal(kw, (d_in, d_out), dtype=jnp.float32)
        w_log_sig = jnp.full((d_in, d_out), -6.0, dtype=jnp.float32)
        b_mu = 0.1 * jax.random.normal(kb, (1, d_out), dtype=jnp.float32)
        b_log_sig = jnp.full((1, d_out), -6.0, dtype=jnp.float32)
        params.append((w_mu, w_log_sig, b_mu, b_log_sig))
    return params


def sample_noise(key, dimensions, activations):
    """Deterministic reparameterization noise for each layer."""
    eps = []
    for i in range(len(activations)):
        d_in, d_out = dimensions[i], dimensions[i + 1]
        key, kw, kb = jax.random.split(key, 3)
        eps_w = jax.random.normal(kw, (d_in, d_out), dtype=jnp.float32)
        eps_b = jax.random.normal(kb, (1, d_out), dtype=jnp.float32)
        eps.append((eps_w, eps_b))
    return eps


def _reference_forward(x, params, eps, activations):
    """Pure-JAX reference for a correctness check."""
    h = x
    for (w_mu, w_ls, b_mu, b_ls), (eps_w, eps_b), act in zip(params, eps, activations):
        w = w_mu + jnp.exp(w_ls) * eps_w
        b = b_mu + jnp.exp(b_ls) * eps_b
        h = h @ w + b
        if act == "relu":
            h = jnp.maximum(h, 0.0)
        elif act == "sigmoid":
            h = jax.nn.sigmoid(h)
    return h


if __name__ == "__main__":
    # Decoder config: latent 32 -> hidden 64 -> output 16, relu then sigmoid
    # (typical VAE decoder in the VCL setting this module comes from).
    dimensions = [32, 64, 16]
    activations = ["relu", "sigmoid"]
    batch = 8  # If drawing S posterior samples, stack them into the batch dim
               # (S*batch rows) to feed the MXU instead of looping the decoder.

    root = jax.random.PRNGKey(0)
    k_x, k_params, k_eps = jax.random.split(root, 3)

    x = jax.random.normal(k_x, (batch, dimensions[0]), dtype=jnp.float32)
    params = init_common_decoder(k_params, dimensions, activations)
    eps = sample_noise(k_eps, dimensions, activations)

    out = common_decoder_forward(x, params, eps, activations)
    out = jax.block_until_ready(out)

    ref = _reference_forward(x, params, eps, activations)
    assert out.shape == (batch, dimensions[-1]), out.shape
    assert jnp.allclose(out, ref, atol=1e-5, rtol=1e-5), "mismatch vs reference"

    # TODO(synk): KL() / update_prior() are training-time bookkeeping (no data path
    # through the forward pass), so they are not implemented as kernels.
    print("KERNEL_OK")
</pallas_src>

<mosaic_0001>
module attributes {stable_mosaic.version = 11 : i64} {
  func.func @_fused_decoder_kernel(%arg0: memref<8x32xf32, #tpu.memory_space<vmem>>, %arg1: memref<3x32x64xf32, #tpu.memory_space<vmem>>, %arg2: memref<3x1x64xf32, #tpu.memory_space<vmem>>, %arg3: memref<3x64x16xf32, #tpu.memory_space<vmem>>, %arg4: memref<3x1x16xf32, #tpu.memory_space<vmem>>, %arg5: memref<8x16xf32, #tpu.memory_space<vmem>>) attributes {dimension_semantics = [], scalar_prefetch = 0 : i64, scratch_operands = 0 : i64, tpu.core_type = #tpu.core_type<tc>} {
    %c0 = arith.constant 0 : index
    %c0_0 = arith.constant 0 : index
    %0 = vector.load %arg0[%c0, %c0_0] : memref<8x32xf32, #tpu.memory_space<vmem>>, vector<8x32xf32>
    %c0_1 = arith.constant 0 : index
    %c0_2 = arith.constant 0 : index
    %c0_3 = arith.constant 0 : index
    %1 = vector.load %arg1[%c0_1, %c0_2, %c0_3] : memref<3x32x64xf32, #tpu.memory_space<vmem>>, vector<1x32x64xf32>
    %2 = vector.shape_cast %1 : vector<1x32x64xf32> to vector<32x64xf32>
    %c1 = arith.constant 1 : index
    %c0_4 = arith.constant 0 : index
    %c0_5 = arith.constant 0 : index
    %3 = vector.load %arg1[%c1, %c0_4, %c0_5] : memref<3x32x64xf32, #tpu.memory_space<vmem>>, vector<1x32x64xf32>
    %4 = vector.shape_cast %3 : vector<1x32x64xf32> to vector<32x64xf32>
    %5 = math.exp %4 : vector<32x64xf32>
    %c2 = arith.constant 2 : index
    %c0_6 = arith.constant 0 : index
    %c0_7 = arith.constant 0 : index
    %6 = vector.load %arg1[%c2, %c0_6, %c0_7] : memref<3x32x64xf32, #tpu.memory_space<vmem>>, vector<1x32x64xf32>
    %7 = vector.shape_cast %6 : vector<1x32x64xf32> to vector<32x64xf32>
    %8 = arith.mulf %5, %7 : vector<32x64xf32>
    %9 = arith.addf %2, %8 : vector<32x64xf32>
    %c0_8 = arith.constant 0 : index
    %c0_9 = arith.constant 0 : index
    %c0_10 = arith.constant 0 : index
    %10 = vector.load %arg2[%c0_8, %c0_9, %c0_10] : memref<3x1x64xf32, #tpu.memory_space<vmem>>, vector<1x1x64xf32>
    %11 = vector.shape_cast %10 : vector<1x1x64xf32> to vector<1x64xf32>
    %c1_11 = arith.constant 1 : index
    %c0_12 = arith.constant 0 : index
    %c0_13 = arith.constant 0 : index
    %12 = vector.load %arg2[%c1_11, %c0_12, %c0_13] : memref<3x1x64xf32, #tpu.memory_space<vmem>>, vector<1x1x64xf32>
    %13 = vector.shape_cast %12 : vector<1x1x64xf32> to vector<1x64xf32>
    %14 = math.exp %13 : vector<1x64xf32>
    %c2_14 = arith.constant 2 : index
    %c0_15 = arith.constant 0 : index
    %c0_16 = arith.constant 0 : index
    %15 = vector.load %arg2[%c2_14, %c0_15, %c0_16] : memref<3x1x64xf32, #tpu.memory_space<vmem>>, vector<1x1x64xf32>
    %16 = vector.shape_cast %15 : vector<1x1x64xf32> to vector<1x64xf32>
    %17 = arith.mulf %14, %16 : vector<1x64xf32>
    %18 = arith.addf %11, %17 : vector<1x64xf32>
    %cst = arith.constant dense<0.000000e+00> : vector<8x64xf32>
    %19 = tpu.matmul %0, %9, %cst {dimension_numbers = #tpu.dot_dimension_numbers<[1], [0], [0], [1], [0, 0, 1, 1], [], []>} : vector<8x32xf32>, vector<32x64xf32>, vector<8x64xf32> -> vector<8x64xf32>
    %20 = vector.broadcast %18 : vector<1x64xf32> to vector<8x64xf32>
    %21 = arith.addf %19, %20 : vector<8x64xf32>
    %cst_17 = arith.constant 0.000000e+00 : f32
    %22 = vector.broadcast %cst_17 : f32 to vector<8x64xf32>
    %23 = arith.maximumf %21, %22 : vector<8x64xf32>
    %c0_18 = arith.constant 0 : index
    %c0_19 = arith.constant 0 : index
    %c0_20 = arith.constant 0 : index
    %24 = vector.load %arg3[%c0_18, %c0_19, %c0_20] : memref<3x64x16xf32, #tpu.memory_space<vmem>>, vector<1x64x16xf32>
    %25 = vector.shape_cast %24 : vector<1x64x16xf32> to vector<64x16xf32>
    %c1_21 = arith.constant 1 : index
    %c0_22 = arith.constant 0 : index
    %c0_23 = arith.constant 0 : index
    %26 = vector.load %arg3[%c1_21, %c0_22, %c0_23] : memref<3x64x16xf32, #tpu.memory_space<vmem>>, vector<1x64x16xf32>
    %27 = vector.shape_cast %26 : vector<1x64x16xf32> to vector<64x16xf32>
    %28 = math.exp %27 : vector<64x16xf32>
    %c2_24 = arith.constant 2 : index
    %c0_25 = arith.constant 0 : index
    %c0_26 = arith.constant 0 : index
    %29 = vector.load %arg3[%c2_24, %c0_25, %c0_26] : memref<3x64x16xf32, #tpu.memory_space<vmem>>, vector<1x64x16xf32>
    %30 = vector.shape_cast %29 : vector<1x64x16xf32> to vector<64x16xf32>
    %31 = arith.mulf %28, %30 : vector<64x16xf32>
    %32 = arith.addf %25, %31 : vector<64x16xf32>
    %c0_27 = arith.constant 0 : index
    %c0_28 = arith.constant 0 : index
    %c0_29 = arith.constant 0 : index
    %33 = vector.load %arg4[%c0_27, %c0_28, %c0_29] : memref<3x1x16xf32, #tpu.memory_space<vmem>>, vector<1x1x16xf32>
    %34 = vector.shape_cast %33 : vector<1x1x16xf32> to vector<1x16xf32>
    %c1_30 = arith.constant 1 : index
    %c0_31 = arith.constant 0 : index
    %c0_32 = arith.constant 0 : index
    %35 = vector.load %arg4[%c1_30, %c0_31, %c0_32] : memref<3x1x16xf32, #tpu.memory_space<vmem>>, vector<1x1x16xf32>
    %36 = vector.shape_cast %35 : vector<1x1x16xf32> to vector<1x16xf32>
    %37 = math.exp %36 : vector<1x16xf32>
    %c2_33 = arith.constant 2 : index
    %c0_34 = arith.constant 0 : index
    %c0_35 = arith.constant 0 : index
    %38 = vector.load %arg4[%c2_33, %c0_34, %c0_35] : memref<3x1x16xf32, #tpu.memory_space<vmem>>, vector<1x1x16xf32>
    %39 = vector.shape_cast %38 : vector<1x1x16xf32> to vector<1x16xf32>
    %40 = arith.mulf %37, %39 : vector<1x16xf32>
    %41 = arith.addf %34, %40 : vector<1x16xf32>
    %cst_36 = arith.constant dense<0.000000e+00> : vector<8x16xf32>
    %42 = tpu.matmul %23, %32, %cst_36 {dimension_numbers = #tpu.dot_dimension_numbers<[1], [0], [0], [1], [0, 0, 1, 1], [], []>} : vector<8x64xf32>, vector<64x16xf32>, vector<8x16xf32> -> vector<8x16xf32>
    %43 = vector.broadcast %41 : vector<1x16xf32> to vector<8x16xf32>
    %44 = arith.addf %42, %43 : vector<8x16xf32>
    %45 = arith.negf %44 : vector<8x16xf32>
    %46 = math.exp %45 : vector<8x16xf32>
    %cst_37 = arith.constant 1.000000e+00 : f32
    %47 = vector.broadcast %cst_37 : f32 to vector<8x16xf32>
    %48 = arith.addf %47, %46 : vector<8x16xf32>
    %49 = arith.divf %47, %48 : vector<8x16xf32>
    %c0_38 = arith.constant 0 : index
    %c0_39 = arith.constant 0 : index
    %50 = vector.load %arg5[%c0_38, %c0_39] : memref<8x16xf32, #tpu.memory_space<vmem>>, vector<8x16xf32>
    tpu.vector_store %arg5[%c0_38, %c0_39], %49 {strides = array<i32>} : memref<8x16xf32, #tpu.memory_space<vmem>>, vector<8x16xf32>,
    return
  }
}

</mosaic_0001>

<llo_original>
// kernel: tpu_custom_call.1
$region0: #{tpu_custom_call.1}
  #allocation0 [shape = 'u32[]', space=smem, size = 0x4, offset = 0x4, fixed_abs, tag = 'smem constant byte address 0x4 - core index']
  #allocation1 [shape = 'u32[144,128]{1,0:T(1,128)}', space=vmem, size = 0x12000, scoped, tag = 'internal scratch']
  %s0 = inlined_call_operand.vmem [shape: f32[8,32], index: 0, kind: input, shape index: {}]
  %s1 = inlined_call_operand.vmem [shape: f32[3,32,64], index: 1, kind: input, shape index: {}]
  %s2 = inlined_call_operand.vmem [shape: f32[3,1,64], index: 2, kind: input, shape index: {}]
  %s3 = inlined_call_operand.vmem [shape: f32[3,64,16], index: 3, kind: input, shape index: {}]
  %s4 = inlined_call_operand.vmem [shape: f32[3,1,16], index: 4, kind: input, shape index: {}]
  %s5 = inlined_call_operand.hbm [shape: f32[8,16], index: 5, kind: output, shape index: {}]
  %s6 = sld [smem:[#allocation0]]
  $region30: #{tpu_custom_call.1} parent=0
    _
  %s8 = ssub.s32 1, %s6
  %s9 = scalar_select 0, %s8, %s6
  $region1: #{tpu_custom_call.1} parent=0
    #allocation2 [shape = 'u8[4096]{0}', space=vmem, size = 0x1000, scoped, tag = 'output window, operand 0, single buffered']
    #allocation3 [shape = 's32[1]{0}', space=sflag, size = 0x4, scoped, tag = 'scoped memory for tpu_custom_call.1']
    %10 = vsyncpa [#allocation3], 0
    // Predicated region
    $region2: #{tpu_custom_call.1} parent=1 // pred_check
      _
    $region3: #{tpu_custom_call.1} parent=1 // pred_check_branch
      %12 = sbr.rel (0) target = $region5
    $region4: #{tpu_custom_call.1} parent=1 // pred_region
      _
    $region5: #{tpu_custom_call.1} parent=1 // pred_fallthru
      _
    // Predicated region
    $region6: #{tpu_custom_call.1} parent=1 // pred_check
      _
    $region7: #{tpu_custom_call.1} parent=1 // pred_check_branch
      %14 = sbr.rel (0) target = $region9
    $region8: #{tpu_custom_call.1} parent=1 // pred_region
      _
    $region9: #{tpu_custom_call.1} parent=1 // pred_fallthru
      _
    // Predicated region
    $region10: #{tpu_custom_call.1} parent=1 // pred_check
      _
    $region11: #{tpu_custom_call.1} parent=1 // pred_check_branch
      %16 = sbr.rel (0) target = $region13
    $region12: #{tpu_custom_call.1} parent=1 // pred_region
      _
    $region13: #{tpu_custom_call.1} parent=1 // pred_fallthru
      _
    // Predicated region
    $region14: #{tpu_custom_call.1} parent=1 // pred_check
      _
    $region15: #{tpu_custom_call.1} parent=1 // pred_check_branch
      %18 = sbr.rel (0) target = $region17
    $region16: #{tpu_custom_call.1} parent=1 // pred_region
      _
    $region17: #{tpu_custom_call.1} parent=1 // pred_fallthru
      _
    // Predicated region
    $region18: #{tpu_custom_call.1} parent=1 // pred_check
      _
    $region19: #{tpu_custom_call.1} parent=1 // pred_check_branch
      %20 = sbr.rel (0) target = $region21
    $region20: #{tpu_custom_call.1} parent=1 // pred_region
      _
    $region21: #{tpu_custom_call.1} parent=1 // pred_fallthru
      _
    %v21 = vld [vmem:[%s0] sm:$0xff]
    %v22 = vld [vmem:[%s1] sm:$0xff]
    %v23 = vld [vmem:[%s1 + $0x8] sm:$0xff]
    %v24 = vld [vmem:[%s1 + $0x10] sm:$0xff]
    %v25 = vld [vmem:[%s1 + $0x18] sm:$0xff]
    %s26 = scalar_lea.vmem %s1, 32
    %v27 = vld [vmem:[%s26] sm:$0xff]
    %v28 = vld [vmem:[%s26 + $0x8] sm:$0xff]
    %v29 = vld [vmem:[%s26 + $0x10] sm:$0xff]
    %v30 = vld [vmem:[%s26 + $0x18] sm:$0xff]
    %v31 = vmul.f32 %v27, 1.442695
    %v32 = vpow.pop %v31
    %v33 = vmul.f32 %v28, 1.442695
    %v34 = vpow.pop %v33
    %v35 = vmul.f32 %v29, 1.442695
    %v36 = vpow.pop %v35
    %v37 = vmul.f32 %v30, 1.442695
    %v38 = vpow.pop %v37
    %s39 = scalar_lea.vmem %s1, 64
    %v40 = vld [vmem:[%s39] sm:$0xff]
    %v41 = vld [vmem:[%s39 + $0x8] sm:$0xff]
    %v42 = vld [vmem:[%s39 + $0x10] sm:$0xff]
    %v43 = vld [vmem:[%s39 + $0x18] sm:$0xff]
    %v44 = vmul.f32 %v32, %v40
    %v45 = vmul.f32 %v34, %v41
    %v46 = vmul.f32 %v36, %v42
    %v47 = vmul.f32 %v38, %v43
    %v48 = vadd.f32 %v22, %v44
    %v49 = vadd.f32 %v23, %v45
    %v50 = vadd.f32 %v24, %v46
    %v51 = vadd.f32 %v25, %v47
    %v52 = vld [vmem:[%s2] sm:$0x1]
    %s53 = scalar_lea.vmem %s2, 1
    %v54 = vld [vmem:[%s53] sm:$0x1]
    %v55 = vmul.f32 %v54, 1.442695
    %v56 = vpow.pop %v55
    %s57 = scalar_lea.vmem %s2, 2
    %v58 = vld [vmem:[%s57] sm:$0x1]
    %v59 = vmul.f32 %v56, %v58
    %v60 = vadd.f32 %v52, %v59
    %v62 = vlaneseq
    %v63 = vshrl.u32 %v62, 7
    %v64 = vsub.s32 0, %v63
    %v65 = vrot.slane %v60, %v64
    %vm67 = vcmask 261120
    %v69 = vsel %vm67, %v21, 0
    %71 = vmatprep.subr.mxu0 0.0
    %72 = vmatpush1.msra.mxu0 0.0
    %73 = vmatprep.subr.mxu0 0.0
    %74 = vmatpush1.msra.mxu0 0.0
    %75 = vmatprep.subr.mxu0 0.0
    %76 = vmatpush1.msra.mxu0 0.0
    %77 = vmatprep.subr.mxu0 0.0
    %78 = vmatpush1.msra.mxu0 0.0
    %79 = vmatprep.subr.mxu0 0.0
    %80 = vmatpush1.msra.mxu0 0.0
    %81 = vmatprep.subr.mxu0 0.0
    %82 = vmatpush1.msra.mxu0 0.0
    %83 = vmatprep.subr.mxu0 0.0
    %84 = vmatpush1.msra.mxu0 0.0
    %85 = vmatprep.subr.mxu0 0.0
    %86 = vmatpush1.msra.mxu0 0.0
    %87 = vmatprep.subr.mxu0 0.0
    %88 = vmatpush1.msra.mxu0 0.0
    %89 = vmatprep.subr.mxu0 0.0
    %90 = vmatpush1.msra.mxu0 0.0
    %91 = vmatprep.subr.mxu0 0.0
    %92 = vmatpush1.msra.mxu0 0.0
    %93 = vmatprep.subr.mxu0 0.0
    %94 = vmatpush1.msra.mxu0 0.0
    %95 = vmatprep.subr.mxu0 0.0
    %96 = vmatpush1.msra.mxu0 %v51
    %97 = vmatprep.subr.mxu0 0.0
    %98 = vmatpush1.msra.mxu0 %v50
    %99 = vmatprep.subr.mxu0 0.0
    %100 = vmatpush1.msra.mxu0 %v49
    %101 = vmatprep.subr.mxu0 0.0
    %102 = vmatpush1.msra.mxu0 %v48
    %103 = vmatprep.subr.mxu0 0.0
    %104 = vmatpush2.msra.mxu0 0.0
    %105 = vmatprep.subr.mxu0 0.0
    %106 = vmatpush2.msra.mxu0 0.0
    %107 = vmatprep.subr.mxu0 0.0
    %108 = vmatpush2.msra.mxu0 0.0
    %109 = vmatprep.subr.mxu0 0.0
    %110 = vmatpush2.msra.mxu0 0.0
    %111 = vmatprep.subr.mxu0 0.0
    %112 = vmatpush2.msra.mxu0 0.0
    %113 = vmatprep.subr.mxu0 0.0
    %114 = vmatpush2.msra.mxu0 0.0
    %115 = vmatprep.subr.mxu0 0.0
    %116 = vmatpush2.msra.mxu0 0.0
    %117 = vmatprep.subr.mxu0 0.0
    %118 = vmatpush2.msra.mxu0 0.0
    %119 = vmatprep.subr.mxu0 0.0
    %120 = vmatpush2.msra.mxu0 0.0
    %121 = vmatprep.subr.mxu0 0.0
    %122 = vmatpush2.msra.mxu0 0.0
    %123 = vmatprep.subr.mxu0 0.0
    %124 = vmatpush2.msra.mxu0 0.0
    %125 = vmatprep.subr.mxu0 0.0
    %126 = vmatpush2.msra.mxu0 0.0
    %127 = vmatprep.subr.mxu0 0.0
    %128 = vmatpush2.msra.mxu0 0.0
    %129 = vmatprep.subr.mxu0 0.0
    %130 = vmatpush2.msra.mxu0 0.0
    %131 = vmatprep.subr.mxu0 0.0
    %132 = vmatpush2.msra.mxu0 0.0
    %133 = vmatprep.subr.mxu0 0.0
    %134 = vmatpush2.msra.mxu0 0.0
    %135 = vmatprep.mubr.f32.mxu0 0.0
    %136 = vmatmul.mubr.f32.gmra.mxu0 %v69
    %v137 = vpop.f32.mrf.mxu0
    %v138 = vadd.f32 %v65, %v137
    %v139 = vpop.f32.mrf.mxu0
    %140 = vdwg.mxu0
    %v141 = vmax.f32 %v138, 0.0
    %v142 = vld [vmem:[%s3] sm:$0xff]
    %v143 = vld [vmem:[%s3 + $0x8] sm:$0xff]
    %v144 = vld [vmem:[%s3 + $0x10] sm:$0xff]
    %v145 = vld [vmem:[%s3 + $0x18] sm:$0xff]
    %v146 = vld [vmem:[%s3 + $0x20] sm:$0xff]
    %v147 = vld [vmem:[%s3 + $0x28] sm:$0xff]
    %v148 = vld [vmem:[%s3 + $0x30] sm:$0xff]
    %v149 = vld [vmem:[%s3 + $0x38] sm:$0xff]
    %s150 = scalar_lea.vmem %s3, 64
    %v151 = vld [vmem:[%s150] sm:$0xff]
    %v152 = vld [vmem:[%s150 + $0x8] sm:$0xff]
    %v153 = vld [vmem:[%s150 + $0x10] sm:$0xff]
    %v154 = vld [vmem:[%s150 + $0x18] sm:$0xff]
    %v155 = vld [vmem:[%s150 + $0x20] sm:$0xff]
    %v156 = vld [vmem:[%s150 + $0x28] sm:$0xff]
    %v157 = vld [vmem:[%s150 + $0x30] sm:$0xff]
    %v158 = vld [vmem:[%s150 + $0x38] sm:$0xff]
    %v159 = vmul.f32 %v151, 1.442695
    %v160 = vpow.pop %v159
    %v161 = vmul.f32 %v152, 1.442695
    %v162 = vpow.pop %v161
    %v163 = vmul.f32 %v153, 1.442695
    %v164 = vpow.pop %v163
    %v165 = vmul.f32 %v154, 1.442695
    %v166 = vpow.pop %v165
    %v167 = vmul.f32 %v155, 1.442695
    %v168 = vpow.pop %v167
    %v169 = vmul.f32 %v156, 1.442695
    %v170 = vpow.pop %v169
    %v171 = vmul.f32 %v157, 1.442695
    %v172 = vpow.pop %v171
    %v173 = vmul.f32 %v158, 1.442695
    %v174 = vpow.pop %v173
    %s175 = scalar_lea.vmem %s3, 128
    %v176 = vld [vmem:[%s175] sm:$0xff]
    %v177 = vld [vmem:[%s175 + $0x8] sm:$0xff]
    %v178 = vld [vmem:[%s175 + $0x10] sm:$0xff]
    %v179 = vld [vmem:[%s175 + $0x18] sm:$0xff]
    %v180 = vld [vmem:[%s175 + $0x20] sm:$0xff]
    %v181 = vld [vmem:[%s175 + $0x28] sm:$0xff]
    %v182 = vld [vmem:[%s175 + $0x30] sm:$0xff]
    %v183 = vld [vmem:[%s175 + $0x38] sm:$0xff]
    %v184 = vmul.f32 %v160, %v176
    %v185 = vmul.f32 %v162, %v177
    %v186 = vmul.f32 %v164, %v178
    %v187 = vmul.f32 %v166, %v179
    %v188 = vmul.f32 %v168, %v180
    %v189 = vmul.f32 %v170, %v181
    %v190 = vmul.f32 %v172, %v182
    %v191 = vmul.f32 %v174, %v183
    %v192 = vadd.f32 %v142, %v184
    %v193 = vadd.f32 %v143, %v185
    %v194 = vadd.f32 %v144, %v186
    %v195 = vadd.f32 %v145, %v187
    %v196 = vadd.f32 %v146, %v188
    %v197 = vadd.f32 %v147, %v189
    %v198 = vadd.f32 %v148, %v190
    %v199 = vadd.f32 %v149, %v191
    %v200 = vld [vmem:[%s4] sm:$0x1]
    %s201 = scalar_lea.vmem %s4, 1
    %v202 = vld [vmem:[%s201] sm:$0x1]
    %v203 = vmul.f32 %v202, 1.442695
    %v204 = vpow.pop %v203
    %s205 = scalar_lea.vmem %s4, 2
    %v206 = vld [vmem:[%s205] sm:$0x1]
    %v207 = vmul.f32 %v204, %v206
    %v208 = vadd.f32 %v200, %v207
    %v210 = vlaneseq
    %v211 = vshrl.u32 %v210, 7
    %v212 = vsub.s32 0, %v211
    %v213 = vrot.slane %v208, %v212
    %vm215 = vcmask 523264
    %v217 = vsel %vm215, %v141, 0
    %219 = vmatprep.subr.mxu0 0.0
    %220 = vmatpush1.msra.mxu0 0.0
    %221 = vmatprep.subr.mxu0 0.0
    %222 = vmatpush1.msra.mxu0 0.0
    %223 = vmatprep.subr.mxu0 0.0
    %224 = vmatpush1.msra.mxu0 0.0
    %225 = vmatprep.subr.mxu0 0.0
    %226 = vmatpush1.msra.mxu0 0.0
    %227 = vmatprep.subr.mxu0 0.0
    %228 = vmatpush1.msra.mxu0 0.0
    %229 = vmatprep.subr.mxu0 0.0
    %230 = vmatpush1.msra.mxu0 0.0
    %231 = vmatprep.subr.mxu0 0.0
    %232 = vmatpush1.msra.mxu0 0.0
    %233 = vmatprep.subr.mxu0 0.0
    %234 = vmatpush1.msra.mxu0 0.0
    %235 = vmatprep.subr.mxu0 0.0
    %236 = vmatpush1.msra.mxu0 %v199
    %237 = vmatprep.subr.mxu0 0.0
    %238 = vmatpush1.msra.mxu0 %v198
    %239 = vmatprep.subr.mxu0 0.0
    %240 = vmatpush1.msra.mxu0 %v197
    %241 = vmatprep.subr.mxu0 0.0
    %242 = vmatpush1.msra.mxu0 %v196
    %243 = vmatprep.subr.mxu0 0.0
    %244 = vmatpush1.msra.mxu0 %v195
    %245 = vmatprep.subr.mxu0 0.0
    %246 = vmatpush1.msra.mxu0 %v194
    %247 = vmatprep.subr.mxu0 0.0
    %248 = vmatpush1.msra.mxu0 %v193
    %249 = vmatprep.subr.mxu0 0.0
    %250 = vmatpush1.msra.mxu0 %v192
    %251 = vmatprep.subr.mxu0 0.0
    %252 = vmatpush2.msra.mxu0 0.0
    %253 = vmatprep.subr.mxu0 0.0
    %254 = vmatpush2.msra.mxu0 0.0
    %255 = vmatprep.subr.mxu0 0.0
    %256 = vmatpush2.msra.mxu0 0.0
    %257 = vmatprep.subr.mxu0 0.0
    %258 = vmatpush2.msra.mxu0 0.0
    %259 = vmatprep.subr.mxu0 0.0
    %260 = vmatpush2.msra.mxu0 0.0
    %261 = vmatprep.subr.mxu0 0.0
    %262 = vmatpush2.msra.mxu0 0.0
    %263 = vmatprep.subr.mxu0 0.0
    %264 = vmatpush2.msra.mxu0 0.0
    %265 = vmatprep.subr.mxu0 0.0
    %266 = vmatpush2.msra.mxu0 0.0
    %267 = vmatprep.subr.mxu0 0.0
    %268 = vmatpush2.msra.mxu0 0.0
    %269 = vmatprep.subr.mxu0 0.0
    %270 = vmatpush2.msra.mxu0 0.0
    %271 = vmatprep.subr.mxu0 0.0
    %272 = vmatpush2.msra.mxu0 0.0
    %273 = vmatprep.subr.mxu0 0.0
    %274 = vmatpush2.msra.mxu0 0.0
    %275 = vmatprep.subr.mxu0 0.0
    %276 = vmatpush2.msra.mxu0 0.0
    %277 = vmatprep.subr.mxu0 0.0
    %278 = vmatpush2.msra.mxu0 0.0
    %279 = vmatprep.subr.mxu0 0.0
    %280 = vmatpush2.msra.mxu0 0.0
    %281 = vmatprep.subr.mxu0 0.0
    %282 = vmatpush2.msra.mxu0 0.0
    %283 = vmatprep.mubr.f32.mxu0 0.0
    %284 = vmatmul.mubr.f32.gmra.mxu0 %v217
    %v285 = vpop.f32.mrf.mxu0
    %v286 = vadd.f32 %v213, %v285
    %v287 = vpop.f32.mrf.mxu0
    %288 = vdwg.mxu0
    %v289 = vxor.u32 %v286, 2147483648
    %v290 = vmul.f32 %v289, 1.442695
    %v291 = vpow.pop %v290
    %v292 = vadd.f32 %v291, 1.0
    %v293 = vrcp.pop %v292
    %v294 = vmul.f32 1.0, %v293
    %vm295 = vcmask 130048
    %296 = vst.msk [vmem:[#allocation2] sm:$0xff] %vm295, %v294
    // Predicated region
    $region22: #{tpu_custom_call.1} parent=1 // pred_check
      _
    $region23: #{tpu_custom_call.1} parent=1 // pred_check_branch
      %298 = sbr.rel (0) target = $region25
    $region24: #{tpu_custom_call.1} parent=1 // pred_region
      %s300 = ssub.s32 128, 128
      %301 = vsyncadd [#allocation3], %s300
      %s303 = sshll.u32 [#allocation2], 4
      %s304 = int_to_ptr.vmem [resolvable:$true] %s303
      %306 = dma.vmem_to_hbm [thread:$0]  %s304, 128, %s5, [#allocation3]
    $region25: #{tpu_custom_call.1} parent=1 // pred_fallthru
      _
    // Predicated region
    $region26: #{tpu_custom_call.1} parent=1 // pred_check
      _
    $region27: #{tpu_custom_call.1} parent=1 // pred_check_branch
      %308 = sbr.rel (0) target = $region29
    $region28: #{tpu_custom_call.1} parent=1 // pred_region
      %309 = dma.done [#allocation3], 128
    $region29: #{tpu_custom_call.1} parent=1 // pred_fallthru
      _
    %310 = vsyncpa [#allocation3], 1

</llo_original>
